<compile_context>
chip_gen: v6e
topology: v6e:2x2x1
jax: 0.10.0
libtpu: 0.0.40
codegen_flags: <defaults>
</compile_context>

<pallas_src>
import jax
import jax.numpy as jnp
from jax.experimental import pallas as pl
from jax.experimental.pallas import tpu as pltpu

F32 = jnp.float32
BF16 = jnp.bfloat16
NEG_BIG = -1e30  # key-mask value (bf16-representable, exp() underflows to 0 in f32)


def _dot_nn(a, b):
    # (M, K) @ (K, N) -> (M, N), f32 accumulation on the MXU.
    return jax.lax.dot_general(a, b, (((1,), (0,)), ((), ())),
                               preferred_element_type=F32)


def _vfa_kernel(q_ref, kt_ref, v_ref, x_ref, o_ref, m_sc, l_sc, acc_sc):
    """One (batch, q-block, kv-block) grid step.

    q_ref  : (1, Ckp, Tq) bf16  pre-projected query  (resident across ki)
    kt_ref : (1, Tk, Ckp) bf16  pre-projected key, transposed, incl. mask channel
    v_ref  : (1, C, Tk)   bf16  pre-projected value (alpha folded in)
    x_ref  : (1, C, Tq)   f32   residual input      (resident across ki)
    scratch: m/l (1, Tq) f32, acc (C, Tq) f32
    """
    ki = pl.program_id(2)
    nk = pl.num_programs(2)

    @pl.when(ki == 0)
    def _init():
        m_sc[...] = jnp.full_like(m_sc, -jnp.inf)
        l_sc[...] = jnp.zeros_like(l_sc)
        acc_sc[...] = jnp.zeros_like(acc_sc)

    kt = kt_ref[0]                                   # (Tk, Ckp) bf16
    q = q_ref[0]                                     # (Ckp, Tq) bf16
    v = v_ref[0]                                     # (C,  Tk)  bf16

    # s_t[j, i] = sum_c k[c, j] * q[c, i]  (mask channel adds -1e30 for padded keys)
    s_t = _dot_nn(kt, q)                             # (Tk, Tq) f32

    # ---- online softmax over the key axis (axis 0), stats in f32 -------------
    m_prev = m_sc[...]                               # (1, Tq)
    m_new = jnp.maximum(m_prev, jnp.max(s_t, axis=0, keepdims=True))
    corr = jnp.exp(m_prev - m_new)                   # (1, Tq)
    p_t = jnp.exp(s_t - m_new)                       # (Tk, Tq) f32
    l_sc[...] = corr * l_sc[...] + jnp.sum(p_t, axis=0, keepdims=True)
    acc_sc[...] = corr * acc_sc[...] + _dot_nn(v, p_t.astype(BF16))   # (C, Tq)
    m_sc[...] = m_new

    # ---- finalize: normalize once, residual add, lane-dense (C, Tq) store ----
    @pl.when(ki == nk - 1)
    def _fin():
        inv_l = pl.reciprocal(l_sc[...], approx=True)                 # (1, Tq)
        o_ref[0] = (acc_sc[...] * inv_l + x_ref[0]).astype(o_ref.dtype)


def _round_up(n, m):
    return ((n + m - 1) // m) * m


def _pick_tile(n_pad, choices):
    for t in choices:
        if t <= n_pad and n_pad % t == 0:
            return t
    return n_pad


def vfa_forward(x_nchw, loss_factor_map, params, qkv_vfa_flag=(1, 1, 1),
                tq=None, tk=None):
    """Pallas implementation of _VisualFieldAttentionModule.forward.

    x_nchw          : (B, C, H, W) float32
    loss_factor_map : (H, W)       float32
    params          : wb/wc (Ck, C), wd (C, C), bb/bc (Ck, 1), bd (C, 1), alpha (1,)
                      (PyTorch (Cout, Cin) 1x1-conv weight layout)
    """
    B, C, H, W = x_nchw.shape
    N = H * W
    Ck = max(C // 8, 1)

    x = x_nchw.reshape(B, C, N).astype(F32)
    lfm = loss_factor_map.reshape(1, N).astype(F32)
    ones = jnp.ones_like(lfm)
    lq = lfm if qkv_vfa_flag[0] == 1 else ones
    lk = lfm if qkv_vfa_flag[1] == 1 else ones
    lv = lfm if qkv_vfa_flag[2] == 1 else ones

    wb, bb = params["wb"].astype(F32), params["bb"].astype(F32)
    wc, bc = params["wc"].astype(F32), params["bc"].astype(F32)
    wd, bd = params["wd"].astype(F32), params["bd"].astype(F32)
    alpha = params["alpha"].reshape(()).astype(F32)

    # ---- 1x1-conv projections hoisted out of the flash loop (computed once).
    # q : (B, Ck, N)   k^T : (B, N, Ck)   v : (B, C, N)  (alpha folded into v)
    q = (jnp.einsum("oc,bcn->bon", wb, x) + bb.reshape(1, Ck, 1)) * lq[None]
    k_t = (jnp.einsum("oc,bcn->bno", wc, x) + bc.reshape(1, 1, Ck)) * lk.reshape(1, N, 1)
    v = ((jnp.einsum("oc,bcn->bon", wd, x) + bd.reshape(1, C, 1)) * lv[None]) * alpha

    # ---- tiles & padding -----------------------------------------------------
    n128 = _round_up(N, 128)
    TQ = tq if tq is not None else _pick_tile(n128, (512, 256, 128))
    TK = tk if tk is not None else _pick_tile(n128, (1024, 512, 256, 128))
    n_pad = _round_up(N, max(TQ, TK))
    assert n_pad % TQ == 0 and n_pad % TK == 0
    Ckp = _round_up(Ck + 1, 16)          # +1 mask channel, padded to full sublane tiles

    q_p = jnp.zeros((B, Ckp, n_pad), BF16)
    q_p = q_p.at[:, :Ck, :N].set(q.astype(BF16))
    q_p = q_p.at[:, Ck, :].set(1.0)                      # mask "ones" channel

    kt_p = jnp.zeros((B, n_pad, Ckp), F32)
    kt_p = kt_p.at[:, :N, :Ck].set(k_t)
    kt_p = kt_p.at[:, N:, Ck].set(NEG_BIG)               # padded keys -> score -1e30
    kt_p = kt_p.astype(BF16)

    v_p = jnp.zeros((B, C, n_pad), BF16)
    v_p = v_p.at[:, :, :N].set(v.astype(BF16))

    x_p = jnp.zeros((B, C, n_pad), F32)
    x_p = x_p.at[:, :, :N].set(x)

    nq = n_pad // TQ
    nk = n_pad // TK

    out = pl.pallas_call(
        _vfa_kernel,
        out_shape=jax.ShapeDtypeStruct((B, C, n_pad), F32),
        grid=(B, nq, nk),
        in_specs=[
            pl.BlockSpec((1, Ckp, TQ), lambda b, qi, ki: (b, 0, qi)),   # q
            pl.BlockSpec((1, TK, Ckp), lambda b, qi, ki: (b, ki, 0)),   # k^T (+mask)
            pl.BlockSpec((1, C, TK), lambda b, qi, ki: (b, 0, ki)),     # v
            pl.BlockSpec((1, C, TQ), lambda b, qi, ki: (b, 0, qi)),     # x (residual)
        ],
        out_specs=pl.BlockSpec((1, C, TQ), lambda b, qi, ki: (b, 0, qi)),
        scratch_shapes=[
            pltpu.VMEM((1, TQ), F32),     # running max m
            pltpu.VMEM((1, TQ), F32),     # running sum l
            pltpu.VMEM((C, TQ), F32),     # un-normalized output accumulator
        ],
        compiler_params=pltpu.CompilerParams(
            dimension_semantics=("parallel", "parallel", "arbitrary")),
    )(q_p, kt_p, v_p, x_p)

    return out[:, :, :N].reshape(B, C, H, W)


def vfa_reference(x_nchw, loss_factor_map, params, qkv_vfa_flag=(1, 1, 1)):
    """Pure-JAX f32 reference mirroring the PyTorch forward (NCHW throughout)."""
    B, C, H, W = x_nchw.shape
    N = H * W
    hp = jax.lax.Precision.HIGHEST
    lfm = loss_factor_map.reshape(1, 1, H, W).astype(F32)
    ones = jnp.ones_like(lfm)
    lq = lfm if qkv_vfa_flag[0] == 1 else ones
    lk = lfm if qkv_vfa_flag[1] == 1 else ones
    lv = lfm if qkv_vfa_flag[2] == 1 else ones

    def conv1x1(x, w, b):   # w: (Cout, Cin), b: (Cout, 1)
        return jnp.einsum("oi,bihw->bohw", w, x, precision=hp) + b.reshape(1, -1, 1, 1)

    q = conv1x1(x_nchw, params["wb"], params["bb"]) * lq
    k = conv1x1(x_nchw, params["wc"], params["bc"]) * lk
    v = conv1x1(x_nchw, params["wd"], params["bd"]) * lv

    feat_b = q.reshape(B, -1, N).transpose(0, 2, 1)             # (B, N, Ck)
    feat_c = k.reshape(B, -1, N)                                # (B, Ck, N)
    attn = jax.nn.softmax(jnp.einsum("bnc,bcm->bnm", feat_b, feat_c, precision=hp),
                          axis=-1)
    feat_d = v.reshape(B, -1, N)                                # (B, C, N)
    feat_e = jnp.einsum("bcn,bmn->bcm", feat_d, attn, precision=hp).reshape(B, C, H, W)
    return params["alpha"].reshape(()) * feat_e + x_nchw


def make_params(key, C):
    Ck = max(C // 8, 1)
    ks = jax.random.split(key, 6)
    return {
        # PyTorch conv-weight layout (Cout, Cin); biases as (Cout, 1).
        "wb": jax.random.normal(ks[0], (Ck, C), F32) * 0.1,
        "bb": jax.random.normal(ks[1], (Ck, 1), F32) * 0.1,
        "wc": jax.random.normal(ks[2], (Ck, C), F32) * 0.1,
        "bc": jax.random.normal(ks[3], (Ck, 1), F32) * 0.1,
        "wd": jax.random.normal(ks[4], (C, C), F32) * 0.1,
        "bd": jax.random.normal(ks[5], (C, 1), F32) * 0.1,
        # NOTE: PyTorch __init__ sets alpha = 0; use a nonzero value so the
        # attention path actually contributes to the output in the test.
        "alpha": jnp.full((1,), 0.5, F32),
    }


if __name__ == "__main__":
    key = jax.random.PRNGKey(0)
    kx, klfm, kp, kx2, klfm2 = jax.random.split(key, 5)

    # Test 1: divisible N, all flags on, multi-tile flash loop (grid = (2, 2, 2)).
    B, C, H, W = 2, 32, 16, 16          # Ck = 4, N = 256
    x = jax.random.normal(kx, (B, C, H, W), F32)
    lfm = jax.random.uniform(klfm, (H, W), F32, 0.5, 1.5)
    params = make_params(kp, C)

    out = jax.block_until_ready(vfa_forward(x, lfm, params, (1, 1, 1), tq=128, tk=128))
    ref = vfa_reference(x, lfm, params, (1, 1, 1))
    assert out.shape == (B, C, H, W)
    err = float(jnp.max(jnp.abs(out - ref)))
    assert jnp.allclose(out, ref, atol=3e-2, rtol=3e-2), f"test1 max abs err {err}"

    # Test 2: N = 144 (not a multiple of 128) -> padded + masked kv tail,
    # plus the qkv_vfa_flag path.
    B2, H2, W2 = 1, 12, 12
    x2 = jax.random.normal(kx2, (B2, C, H2, W2), F32)
    lfm2 = jax.random.uniform(klfm2, (H2, W2), F32, 0.5, 1.5)
    out2 = jax.block_until_ready(vfa_forward(x2, lfm2, params, (1, 0, 1), tq=128, tk=128))
    ref2 = vfa_reference(x2, lfm2, params, (1, 0, 1))
    err2 = float(jnp.max(jnp.abs(out2 - ref2)))
    assert jnp.allclose(out2, ref2, atol=3e-2, rtol=3e-2), f"test2 max abs err {err2}"

    print("KERNEL_OK")
</pallas_src>

<mosaic_0001>
module attributes {stable_mosaic.version = 11 : i64} {
  func.func @_vfa_kernel(%arg0: i32, %arg1: i32, %arg2: i32, %arg3: memref<1x16x128xbf16, #tpu.memory_space<vmem>>, %arg4: memref<1x128x16xbf16, #tpu.memory_space<vmem>>, %arg5: memref<1x32x128xbf16, #tpu.memory_space<vmem>>, %arg6: memref<1x32x128xf32, #tpu.memory_space<vmem>>, %arg7: memref<1x32x128xf32, #tpu.memory_space<vmem>>, %arg8: memref<1x128xf32, #tpu.memory_space<vmem>>, %arg9: memref<1x128xf32, #tpu.memory_space<vmem>>, %arg10: memref<32x128xf32, #tpu.memory_space<vmem>>) attributes {dimension_semantics = [#tpu.dimension_semantics<parallel>, #tpu.dimension_semantics<parallel>, #tpu.dimension_semantics<arbitrary>], iteration_bounds = array<i64: 2, 2, 2>, scalar_prefetch = 0 : i64, scratch_operands = 3 : i64, tpu.core_type = #tpu.core_type<tc>, window_params = [{transform_indices = @transform_0, window_bounds = array<i64: 1, 16, 128>}, {transform_indices = @transform_1, window_bounds = array<i64: 1, 128, 16>}, {transform_indices = @transform_2, window_bounds = array<i64: 1, 32, 128>}, {transform_indices = @transform_3, window_bounds = array<i64: 1, 32, 128>}, {transform_indices = @transform_4, window_bounds = array<i64: 1, 32, 128>}]} {
    %c0_i32 = arith.constant 0 : i32
    %0 = arith.cmpi eq, %arg2, %c0_i32 : i32
    %1 = arith.extui %0 : i1 to i32
    %c0_i32_0 = arith.constant 0 : i32
    %2 = arith.cmpi ne, %1, %c0_i32_0 : i32
    scf.if %2 {
      %cst_25 = arith.constant 0xFF800000 : f32
      %36 = vector.broadcast %cst_25 : f32 to vector<1x128xf32>
      %c0_26 = arith.constant 0 : index
      %c0_27 = arith.constant 0 : index
      %37 = vector.load %arg8[%c0_26, %c0_27] : memref<1x128xf32, #tpu.memory_space<vmem>>, vector<1x128xf32>
      tpu.vector_store %arg8[%c0_26, %c0_27], %36 {strides = array<i32>} : memref<1x128xf32, #tpu.memory_space<vmem>>, vector<1x128xf32>,
      %cst_28 = arith.constant 0.000000e+00 : f32
      %38 = vector.broadcast %cst_28 : f32 to vector<1x128xf32>
      %c0_29 = arith.constant 0 : index
      %c0_30 = arith.constant 0 : index
      %39 = vector.load %arg9[%c0_29, %c0_30] : memref<1x128xf32, #tpu.memory_space<vmem>>, vector<1x128xf32>
      tpu.vector_store %arg9[%c0_29, %c0_30], %38 {strides = array<i32>} : memref<1x128xf32, #tpu.memory_space<vmem>>, vector<1x128xf32>,
      %cst_31 = arith.constant 0.000000e+00 : f32
      %40 = vector.broadcast %cst_31 : f32 to vector<32x128xf32>
      %c0_32 = arith.constant 0 : index
      %c0_33 = arith.constant 0 : index
      %41 = vector.load %arg10[%c0_32, %c0_33] : memref<32x128xf32, #tpu.memory_space<vmem>>, vector<32x128xf32>
      tpu.vector_store %arg10[%c0_32, %c0_33], %40 {strides = array<i32>} : memref<32x128xf32, #tpu.memory_space<vmem>>, vector<32x128xf32>,
    } else {
    }
    %c0 = arith.constant 0 : index
    %c0_1 = arith.constant 0 : index
    %c0_2 = arith.constant 0 : index
    %3 = vector.load %arg4[%c0, %c0_1, %c0_2] : memref<1x128x16xbf16, #tpu.memory_space<vmem>>, vector<1x128x16xbf16>
    %4 = vector.shape_cast %3 : vector<1x128x16xbf16> to vector<128x16xbf16>
    %c0_3 = arith.constant 0 : index
    %c0_4 = arith.constant 0 : index
    %c0_5 = arith.constant 0 : index
    %5 = vector.load %arg3[%c0_3, %c0_4, %c0_5] : memref<1x16x128xbf16, #tpu.memory_space<vmem>>, vector<1x16x128xbf16>
    %6 = vector.shape_cast %5 : vector<1x16x128xbf16> to vector<16x128xbf16>
    %c0_6 = arith.constant 0 : index
    %c0_7 = arith.constant 0 : index
    %c0_8 = arith.constant 0 : index
    %7 = vector.load %arg5[%c0_6, %c0_7, %c0_8] : memref<1x32x128xbf16, #tpu.memory_space<vmem>>, vector<1x32x128xbf16>
    %8 = vector.shape_cast %7 : vector<1x32x128xbf16> to vector<32x128xbf16>
    %cst = arith.constant dense<0.000000e+00> : vector<128x128xf32>
    %9 = tpu.matmul %4, %6, %cst {dimension_numbers = #tpu.dot_dimension_numbers<[1], [0], [0], [1], [0, 0, 1, 1], [], []>} : vector<128x16xbf16>, vector<16x128xbf16>, vector<128x128xf32> -> vector<128x128xf32>
    %c0_9 = arith.constant 0 : index
    %c0_10 = arith.constant 0 : index
    %10 = vector.load %arg8[%c0_9, %c0_10] : memref<1x128xf32, #tpu.memory_space<vmem>>, vector<1x128xf32>
    %cst_11 = arith.constant dense<0xFF800000> : vector<128xf32>
    %11 = vector.multi_reduction <maximumf>, %9, %cst_11 [0] : vector<128x128xf32> to vector<128xf32>
    %12 = vector.shape_cast %11 : vector<128xf32> to vector<1x128xf32>
    %13 = arith.maximumf %10, %12 : vector<1x128xf32>
    %14 = arith.subf %10, %13 : vector<1x128xf32>
    %15 = math.exp %14 : vector<1x128xf32>
    %16 = vector.broadcast %13 : vector<1x128xf32> to vector<128x128xf32>
    %17 = arith.subf %9, %16 : vector<128x128xf32>
    %18 = math.exp %17 : vector<128x128xf32>
    %c0_12 = arith.constant 0 : index
    %c0_13 = arith.constant 0 : index
    %19 = vector.load %arg9[%c0_12, %c0_13] : memref<1x128xf32, #tpu.memory_space<vmem>>, vector<1x128xf32>
    %20 = arith.mulf %15, %19 : vector<1x128xf32>
    %cst_14 = arith.constant dense<0.000000e+00> : vector<128xf32>
    %21 = vector.multi_reduction <add>, %18, %cst_14 [0] : vector<128x128xf32> to vector<128xf32>
    %22 = vector.shape_cast %21 : vector<128xf32> to vector<1x128xf32>
    %23 = arith.addf %20, %22 : vector<1x128xf32>
    %c0_15 = arith.constant 0 : index
    %c0_16 = arith.constant 0 : index
    %24 = vector.load %arg9[%c0_15, %c0_16] : memref<1x128xf32, #tpu.memory_space<vmem>>, vector<1x128xf32>
    tpu.vector_store %arg9[%c0_15, %c0_16], %23 {strides = array<i32>} : memref<1x128xf32, #tpu.memory_space<vmem>>, vector<1x128xf32>,
    %c0_17 = arith.constant 0 : index
    %c0_18 = arith.constant 0 : index
    %25 = vector.load %arg10[%c0_17, %c0_18] : memref<32x128xf32, #tpu.memory_space<vmem>>, vector<32x128xf32>
    %26 = vector.broadcast %15 : vector<1x128xf32> to vector<32x128xf32>
    %27 = arith.mulf %26, %25 : vector<32x128xf32>
    %28 = arith.truncf %18 : vector<128x128xf32> to vector<128x128xbf16>
    %cst_19 = arith.constant dense<0.000000e+00> : vector<32x128xf32>
    %29 = tpu.matmul %8, %28, %cst_19 {dimension_numbers = #tpu.dot_dimension_numbers<[1], [0], [0], [1], [0, 0, 1, 1], [], []>} : vector<32x128xbf16>, vector<128x128xbf16>, vector<32x128xf32> -> vector<32x128xf32>
    %30 = arith.addf %27, %29 : vector<32x128xf32>
    %c0_20 = arith.constant 0 : index
    %c0_21 = arith.constant 0 : index
    %31 = vector.load %arg10[%c0_20, %c0_21] : memref<32x128xf32, #tpu.memory_space<vmem>>, vector<32x128xf32>
    tpu.vector_store %arg10[%c0_20, %c0_21], %30 {strides = array<i32>} : memref<32x128xf32, #tpu.memory_space<vmem>>, vector<32x128xf32>,
    %c0_22 = arith.constant 0 : index
    %c0_23 = arith.constant 0 : index
    %32 = vector.load %arg8[%c0_22, %c0_23] : memref<1x128xf32, #tpu.memory_space<vmem>>, vector<1x128xf32>
    tpu.vector_store %arg8[%c0_22, %c0_23], %13 {strides = array<i32>} : memref<1x128xf32, #tpu.memory_space<vmem>>, vector<1x128xf32>,
    %c1_i32 = arith.constant 1 : i32
    %33 = arith.cmpi eq, %arg2, %c1_i32 : i32
    %34 = arith.extui %33 : i1 to i32
    %c0_i32_24 = arith.constant 0 : i32
    %35 = arith.cmpi ne, %34, %c0_i32_24 : i32
    scf.if %35 {
      %c0_25 = arith.constant 0 : index
      %c0_26 = arith.constant 0 : index
      %36 = vector.load %arg9[%c0_25, %c0_26] : memref<1x128xf32, #tpu.memory_space<vmem>>, vector<1x128xf32>
      %37 = tpu.reciprocal %36 {approx = true} : vector<1x128xf32> -> vector<1x128xf32>
      %c0_27 = arith.constant 0 : index
      %c0_28 = arith.constant 0 : index
      %38 = vector.load %arg10[%c0_27, %c0_28] : memref<32x128xf32, #tpu.memory_space<vmem>>, vector<32x128xf32>
      %39 = vector.broadcast %37 : vector<1x128xf32> to vector<32x128xf32>
      %40 = arith.mulf %38, %39 : vector<32x128xf32>
      %c0_29 = arith.constant 0 : index
      %c0_30 = arith.constant 0 : index
      %c0_31 = arith.constant 0 : index
      %41 = vector.load %arg6[%c0_29, %c0_30, %c0_31] : memref<1x32x128xf32, #tpu.memory_space<vmem>>, vector<1x32x128xf32>
      %42 = vector.shape_cast %41 : vector<1x32x128xf32> to vector<32x128xf32>
      %43 = arith.addf %40, %42 : vector<32x128xf32>
      %c0_32 = arith.constant 0 : index
      %c0_33 = arith.constant 0 : index
      %c0_34 = arith.constant 0 : index
      %44 = vector.load %arg7[%c0_32, %c0_33, %c0_34] : memref<1x32x128xf32, #tpu.memory_space<vmem>>, vector<1x32x128xf32>
      %45 = vector.shape_cast %44 : vector<1x32x128xf32> to vector<32x128xf32>
      %46 = vector.shape_cast %43 : vector<32x128xf32> to vector<1x32x128xf32>
      tpu.vector_store %arg7[%c0_32, %c0_33, %c0_34], %46 {strides = array<i32>} : memref<1x32x128xf32, #tpu.memory_space<vmem>>, vector<1x32x128xf32>,
    } else {
    }
    return
  }
  func.func @transform_0(%arg0: i32, %arg1: i32, %arg2: i32) -> (i32, i32, i32) {
    %c0_i32 = arith.constant 0 : i32
    %c0_i32_0 = arith.constant 0 : i32
    return %arg0, %c0_i32, %arg1 : i32, i32, i32
  }
  func.func @transform_1(%arg0: i32, %arg1: i32, %arg2: i32) -> (i32, i32, i32) {
    %c0_i32 = arith.constant 0 : i32
    %c0_i32_0 = arith.constant 0 : i32
    return %arg0, %arg2, %c0_i32 : i32, i32, i32
  }
  func.func @transform_2(%arg0: i32, %arg1: i32, %arg2: i32) -> (i32, i32, i32) {
    %c0_i32 = arith.constant 0 : i32
    %c0_i32_0 = arith.constant 0 : i32
    return %arg0, %c0_i32, %arg2 : i32, i32, i32
  }
  func.func @transform_3(%arg0: i32, %arg1: i32, %arg2: i32) -> (i32, i32, i32) {
    %c0_i32 = arith.constant 0 : i32
    %c0_i32_0 = arith.constant 0 : i32
    return %arg0, %c0_i32, %arg1 : i32, i32, i32
  }
  func.func @transform_4(%arg0: i32, %arg1: i32, %arg2: i32) -> (i32, i32, i32) {
    %c0_i32 = arith.constant 0 : i32
    %c0_i32_0 = arith.constant 0 : i32
    return %arg0, %c0_i32, %arg1 : i32, i32, i32
  }
}

</mosaic_0001>

<llo_original>
// kernel: tpu_custom_call.1
$region0: #{tpu_custom_call.1}
  #allocation0 [shape = 'u32[]', space=smem, size = 0x4, offset = 0x4, fixed_abs, tag = 'smem constant byte address 0x4 - core index']
  #allocation1 [shape = 'u32[144,128]{1,0:T(1,128)}', space=vmem, size = 0x12000, scoped, tag = 'internal scratch']
  #allocation2 [shape = 'f32[1,128]{1,0:T(1,128)}', space=vmem, size = 0x200, scoped, tag = 'scratch operand']
  #allocation3 [shape = 'f32[1,128]{1,0:T(1,128)}', space=vmem, size = 0x200, scoped, tag = 'scratch operand']
  #allocation4 [shape = 'f32[32,128]{1,0:T(8,128)}', space=vmem, size = 0x4000, scoped, tag = 'scratch operand']
  %s0 = inlined_call_operand.vmem [shape: bf16[2,16,256], index: 0, kind: input, shape index: {}]
  %s1 = inlined_call_operand.vmem [shape: bf16[2,256,16], index: 1, kind: input, shape index: {}]
  %s2 = inlined_call_operand.vmem [shape: bf16[2,32,256], index: 2, kind: input, shape index: {}]
  %s3 = inlined_call_operand.vmem [shape: f32[2,32,256], index: 3, kind: input, shape index: {}]
  %s4 = inlined_call_operand.hbm [shape: f32[2,32,256], index: 4, kind: output, shape index: {}]
  %s5 = sld [smem:[#allocation0]]
  $region177: #{tpu_custom_call.1} parent=0
    _
  %s7 = ssub.s32 1, %s5
  %s8 = scalar_select 0, %s7, %s5
  $region1: #{tpu_custom_call.1} parent=0
    #allocation5 [shape = 'u8[8192]{0}', space=vmem, size = 0x2000, scoped, tag = 'input window, operand 0']
    #allocation6 [shape = 'u8[16384]{0}', space=vmem, size = 0x4000, scoped, tag = 'input window, operand 2']
    #allocation7 [shape = 'u8[32768]{0}', space=vmem, size = 0x8000, scoped, tag = 'input window, operand 3']
    #allocation8 [shape = 'u8[32768]{0}', space=vmem, size = 0x8000, scoped, tag = 'output window, operand 0']
    #allocation9 [shape = 's32[2]{0}', space=sflag, size = 0x8, scoped, tag = 'scoped memory for tpu_custom_call.1']
    %9 = vsyncpa [#allocation9], 0
    %s10 = scalar_lea.sflag [#allocation9], 1
    %11 = vsyncpa %s10, 0
    loop: start=0, step=1, limit=10
    $region2: #{tpu_custom_call.1} parent=1 // loop_pre_header
      _
    $region3: #{tpu_custom_call.1} parent=1 // loop_header
      %s13 = sphi 0, %s17
      %p14 = scmp.ge.s32.totalorder %s13, 10
      %s20 = sphi 0, %s39
      %s21 = sphi 0, %s35
      %s22 = sphi 0, %s31
      %s23 = sphi 0, %s20
      %s24 = sphi 0, %s21
      %s25 = sphi 0, %s22
      %s26 = sphi 0, %s23
      %s27 = sphi 0, %s24
      %s28 = sphi 0, %s25
      %s44 = sphi 0, %s46
      %s47 = sphi 0, %s44
      %s48 = sphi 0, %s47
      %s64 = sphi 0, %s48
      %s72 = sphi 0, %s74
      %s75 = sphi 0, %s72
      %s76 = sphi 0, %s75
      %s92 = sphi 0, %s76
      %s100 = sphi 0, %s102
      %s103 = sphi 0, %s100
      %s104 = sphi 0, %s103
      %s120 = sphi 0, %s104
      %s128 = sphi 0, %s130
      %s131 = sphi 0, %s128
      %s132 = sphi 0, %s131
      %s148 = sphi 0, %s132
      %s156 = sphi 0, %s158
      %s159 = sphi 0, %s156
      %s160 = sphi 0, %s159
      %s176 = sphi 0, %s160
    $region4: #{tpu_custom_call.1} parent=1 // loop_header_branch
      %16 = sbr.rel (%p14) target = $region8
    $region5: #{tpu_custom_call.1} parent=1 // loop_body
      %s18 = ssub.s32 %s13, 1
      %s19 = ssub.s32 %s13, 2
      %s29 = sadd.s32 1, %s22
      %p30 = scmp.ge.s32.totalorder %s29, 2
      %s31 = scalar_select %p30, 0, %s29
      %s32 = sadd.s32 1, %s21
      %s33 = scalar_select %p30, %s32, %s21
      %p34 = scmp.ge.s32.totalorder %s33, 2
      %s35 = scalar_select %p34, 0, %s33
      %s36 = sadd.s32 1, %s20
      %s37 = scalar_select %p34, %s36, %s20
      %p38 = scmp.ge.s32.totalorder %s37, 2
      %s39 = scalar_select %p38, 0, %s37
      %s40 = ssub.s32 %s20, %s39
      %s41 = ssub.s32 %s21, %s35
      %s42 = sor.u32 %s40, %s41
      %p43 = scmp.eq.s32.totalorder %s42, 0
      %s45 = sadd.s32 %s44, 1
      %s46 = scalar_select %p43, %s44, %s45
      %p49 = pneg %p43
      %p50 = scmp.eq.s32.totalorder %s13, 7
      %p51 = por %p49, %p50
      %p52 = scmp.ne.s32.totalorder %s44, %s47
      %p53 = scmp.eq.s32.totalorder %s13, 0
      %p54 = por %p52, %p53
      %p55 = scmp.ne.s32.totalorder %s44, %s47
      %p56 = scmp.eq.s32.totalorder %s18, 7
      %p57 = por %p55, %p56
      %p58 = scmp.ne.s32.totalorder %s47, %s48
      %p59 = scmp.eq.s32.totalorder %s18, 0
      %p60 = por %p58, %p59
      %p61 = scmp.ne.s32.totalorder %s47, %s48
      %p62 = scmp.eq.s32.totalorder %s19, 7
      %p63 = por %p61, %p62
      %p65 = scmp.ne.s32.totalorder %s48, %s64
      %p66 = scmp.eq.s32.totalorder %s19, 0
      %p67 = por %p65, %p66
      %s68 = ssub.s32 %s20, %s39
      %s69 = ssub.s32 %s22, %s31
      %s70 = sor.u32 %s68, %s69
      %p71 = scmp.eq.s32.totalorder %s70, 0
      %s73 = sadd.s32 %s72, 1
      %s74 = scalar_select %p71, %s72, %s73
      %p77 = pneg %p71
      %p78 = scmp.eq.s32.totalorder %s13, 7
      %p79 = por %p77, %p78
      %p80 = scmp.ne.s32.totalorder %s72, %s75
      %p81 = scmp.eq.s32.totalorder %s13, 0
      %p82 = por %p80, %p81
      %p83 = scmp.ne.s32.totalorder %s72, %s75
      %p84 = scmp.eq.s32.totalorder %s18, 7
      %p85 = por %p83, %p84
      %p86 = scmp.ne.s32.totalorder %s75, %s76
      %p87 = scmp.eq.s32.totalorder %s18, 0
      %p88 = por %p86, %p87
      %p89 = scmp.ne.s32.totalorder %s75, %s76
      %p90 = scmp.eq.s32.totalorder %s19, 7
      %p91 = por %p89, %p90
      %p93 = scmp.ne.s32.totalorder %s76, %s92
      %p94 = scmp.eq.s32.totalorder %s19, 0
      %p95 = por %p93, %p94
      %s96 = ssub.s32 %s20, %s39
      %s97 = ssub.s32 %s22, %s31
      %s98 = sor.u32 %s96, %s97
      %p99 = scmp.eq.s32.totalorder %s98, 0
      %s101 = sadd.s32 %s100, 1
      %s102 = scalar_select %p99, %s100, %s101
      %p105 = pneg %p99
      %p106 = scmp.eq.s32.totalorder %s13, 7
      %p107 = por %p105, %p106
      %p108 = scmp.ne.s32.totalorder %s100, %s103
      %p109 = scmp.eq.s32.totalorder %s13, 0
      %p110 = por %p108, %p109
      %p111 = scmp.ne.s32.totalorder %s100, %s103
      %p112 = scmp.eq.s32.totalorder %s18, 7
      %p113 = por %p111, %p112
      %p114 = scmp.ne.s32.totalorder %s103, %s104
      %p115 = scmp.eq.s32.totalorder %s18, 0
      %p116 = por %p114, %p115
      %p117 = scmp.ne.s32.totalorder %s103, %s104
      %p118 = scmp.eq.s32.totalorder %s19, 7
      %p119 = por %p117, %p118
      %p121 = scmp.ne.s32.totalorder %s104, %s120
      %p122 = scmp.eq.s32.totalorder %s19, 0
      %p123 = por %p121, %p122
      %s124 = ssub.s32 %s20, %s39
      %s125 = ssub.s32 %s21, %s35
      %s126 = sor.u32 %s124, %s125
      %p127 = scmp.eq.s32.totalorder %s126, 0
      %s129 = sadd.s32 %s128, 1
      %s130 = scalar_select %p127, %s128, %s129
      %p133 = pneg %p127
      %p134 = scmp.eq.s32.totalorder %s13, 7
      %p135 = por %p133, %p134
      %p136 = scmp.ne.s32.totalorder %s128, %s131
      %p137 = scmp.eq.s32.totalorder %s13, 0
      %p138 = por %p136, %p137
      %p139 = scmp.ne.s32.totalorder %s128, %s131
      %p140 = scmp.eq.s32.totalorder %s18, 7
      %p141 = por %p139, %p140
      %p142 = scmp.ne.s32.totalorder %s131, %s132
      %p143 = scmp.eq.s32.totalorder %s18, 0
      %p144 = por %p142, %p143
      %p145 = scmp.ne.s32.totalorder %s131, %s132
      %p146 = scmp.eq.s32.totalorder %s19, 7
      %p147 = por %p145, %p146
      %p149 = scmp.ne.s32.totalorder %s132, %s148
      %p150 = scmp.eq.s32.totalorder %s19, 0
      %p151 = por %p149, %p150
      %s152 = ssub.s32 %s20, %s39
      %s153 = ssub.s32 %s21, %s35
      %s154 = sor.u32 %s152, %s153
      %p155 = scmp.eq.s32.totalorder %s154, 0
      %s157 = sadd.s32 %s156, 1
      %s158 = scalar_select %p155, %s156, %s157
      %p161 = pneg %p155
      %p162 = scmp.eq.s32.totalorder %s13, 7
      %p163 = por %p161, %p162
      %p164 = scmp.ne.s32.totalorder %s156, %s159
      %p165 = scmp.eq.s32.totalorder %s13, 0
      %p166 = por %p164, %p165
      %p167 = scmp.ne.s32.totalorder %s156, %s159
      %p168 = scmp.eq.s32.totalorder %s18, 7
      %p169 = por %p167, %p168
      %p170 = scmp.ne.s32.totalorder %s159, %s160
      %p171 = scmp.eq.s32.totalorder %s18, 0
      %p172 = por %p170, %p171
      %p173 = scmp.ne.s32.totalorder %s159, %s160
      %p174 = scmp.eq.s32.totalorder %s19, 7
      %p175 = por %p173, %p174
      %p177 = scmp.ne.s32.totalorder %s160, %s176
      %p178 = scmp.eq.s32.totalorder %s19, 0
      %p179 = por %p177, %p178
      %p180 = scmp.le.s32.totalorder 1, %s13
      %p181 = scmp.lt.s32.totalorder %s13, 9
      %p182 = pnand %p180, %p181
      %p183 = pneg %p182
      // Predicated region
      $region9: #{tpu_custom_call.1} parent=5 // pred_check
        _
      $region10: #{tpu_custom_call.1} parent=5 // pred_check_branch
        %185 = sbr.rel (%p182) target = $region12
      $region11: #{tpu_custom_call.1} parent=5 // pred_region
        %s186 = ssub.s32 %s13, 1
      $region12: #{tpu_custom_call.1} parent=5 // pred_fallthru
        _
      %p187 = scmp.lt.s32.totalorder %s13, 8
      // Predicated region
      $region13: #{tpu_custom_call.1} parent=5 // pred_check
        %p188 = pneg %p187
      $region14: #{tpu_custom_call.1} parent=5 // pred_check_branch
        %190 = sbr.rel (%p188) target = $region16
      $region15: #{tpu_custom_call.1} parent=5 // pred_region
        // Predicated region
        $region17: #{tpu_custom_call.1} parent=15 // pred_check
          %p191 = pneg %p54
        $region18: #{tpu_custom_call.1} parent=15 // pred_check_branch
          %193 = sbr.rel (%p191) target = $region20
        $region19: #{tpu_custom_call.1} parent=15 // pred_region
          %s194 = sand.u32 %s44, 1
          %s195 = sand.u32 %s44, 1
          %s196 = smul.addr %s195, 8
          %s197 = scalar_lea.vmem [#allocation5], %s196
          %s198 = smul.addr %s20, 4
          %s199 = sadd.s32 %s21, %s198
          %s200 = smul.addr %s199, 4
          %s201 = scalar_lea.vmem %s0, %s200
          // Predicated region
          $region21: #{tpu_custom_call.1} parent=19 // pred_check
            _
          $region22: #{tpu_custom_call.1} parent=19 // pred_check_branch
            %203 = sbr.rel (0) target = $region24
          $region23: #{tpu_custom_call.1} parent=19 // pred_region
            // Predicated region
            $region25: #{tpu_custom_call.1} parent=23 // pred_check
              _
            $region26: #{tpu_custom_call.1} parent=23 // pred_check_branch
              %205 = sbr.rel target = $region28
            $region27: #{tpu_custom_call.1} parent=23 // pred_region
              // Predicated region
              $region40: #{tpu_custom_call.1} parent=27 // pred_check
                _
              $region41: #{tpu_custom_call.1} parent=27 // pred_check_branch
                %223 = sbr.rel (0) target = $region43
              $region42: #{tpu_custom_call.1} parent=27 // pred_region
                loop: start=0, step=1, limit=1
                $region44: #{tpu_custom_call.1} parent=42 // loop_pre_header
                  _
                $region45: #{tpu_custom_call.1} parent=42 // loop_header
                  %s225 = sphi 0, %s229
                  %p226 = scmp.ge.s32.totalorder %s225, 1
                  %s230 = sphi %s201, %s201
                  %s231 = sphi %s197, %s197
                $region46: #{tpu_custom_call.1} parent=42 // loop_header_branch
                  %228 = sbr.rel (%p226) target = $region50
                $region47: #{tpu_custom_call.1} parent=42 // loop_body
                  _
                $region48: #{tpu_custom_call.1} parent=42 // loop_footer
                  %s229 = sadd.s32 1, %s225
                $region49: #{tpu_custom_call.1} parent=42 // loop_footer_branch
                  %224 = sbr.rel target = $region45
                $region50: #{tpu_custom_call.1} parent=42 // loop_exit
                  _
                %s233 = ssub.s32 16, 1
                loop: start=0, step=1, limit=1
                $region51: #{tpu_custom_call.1} parent=42 // loop_pre_header
                  _
                $region52: #{tpu_custom_call.1} parent=42 // loop_header
                  %s235 = sphi 0, %s239
                  %p236 = scmp.ge.s32.totalorder %s235, 1
                  %s240 = sphi %s201, %s201
                  %s241 = sphi %s197, %s197
                $region53: #{tpu_custom_call.1} parent=42 // loop_header_branch
                  %238 = sbr.rel (%p236) target = $region57
                $region54: #{tpu_custom_call.1} parent=42 // loop_body
                  %v242 = vld [vmem:[%s240] sm:%s233]
                  %243 = vst [vmem:[%s241] sm:%s233] %v242
                  %v244 = vld [vmem:[%s240 + $0x8] sm:%s233]
                  %245 = vst [vmem:[%s241 + $0x4] sm:%s233] %v244
                $region55: #{tpu_custom_call.1} parent=42 // loop_footer
                  %s239 = sadd.s32 1, %s235
                $region56: #{tpu_custom_call.1} parent=42 // loop_footer_branch
                  %234 = sbr.rel target = $region52
                $region57: #{tpu_custom_call.1} parent=42 // loop_exit
                  _
              $region43: #{tpu_custom_call.1} parent=27 // pred_fallthru
                _
            $region28: #{tpu_custom_call.1} parent=23 // pred_fallthru
              _
            // Predicated region
            $region29: #{tpu_custom_call.1} parent=23 // pred_check
              _
            $region30: #{tpu_custom_call.1} parent=23 // pred_check_branch
              %207 = sbr.rel (0) target = $region32
            $region31: #{tpu_custom_call.1} parent=23 // pred_region
              %s209 = ssub.s32 16, 1
              loop: start=0, step=1, limit=1
              $region33: #{tpu_custom_call.1} parent=31 // loop_pre_header
                _
              $region34: #{tpu_custom_call.1} parent=31 // loop_header
                %s211 = sphi 0, %s215
                %p212 = scmp.ge.s32.totalorder %s211, 1
                %s216 = sphi %s201, %s201
                %s217 = sphi %s197, %s197
              $region35: #{tpu_custom_call.1} parent=31 // loop_header_branch
                %214 = sbr.rel (%p212) target = $region39
              $region36: #{tpu_custom_call.1} parent=31 // loop_body
                %v218 = vld [vmem:[%s216] sm:%s209]
                %219 = vst [vmem:[%s217] sm:%s209] %v218
                %v220 = vld [vmem:[%s216 + $0x8] sm:%s209]
                %221 = vst [vmem:[%s217 + $0x4] sm:%s209] %v220
              $region37: #{tpu_custom_call.1} parent=31 // loop_footer
                %s215 = sadd.s32 1, %s211
              $region38: #{tpu_custom_call.1} parent=31 // loop_footer_branch
                %210 = sbr.rel target = $region34
              $region39: #{tpu_custom_call.1} parent=31 // loop_exit
                _
            $region32: #{tpu_custom_call.1} parent=23 // pred_fallthru
              _
          $region24: #{tpu_custom_call.1} parent=19 // pred_fallthru
            _
          %246 = vnop
        $region20: #{tpu_custom_call.1} parent=15 // pred_fallthru
          _
        // Predicated region
        $region58: #{tpu_custom_call.1} parent=15 // pred_check
          %p247 = pneg %p82
        $region59: #{tpu_custom_call.1} parent=15 // pred_check_branch
          %249 = sbr.rel (%p247) target = $region61
        $region60: #{tpu_custom_call.1} parent=15 // pred_region
          %s250 = smul.u32 16, %s22
          %p251 = scmp.lt.s32.totalorder %s20, 1
          %s252 = scalar_select %p251, %s20, 1
          %p253 = scmp.lt.s32.totalorder %s250, 31
          %s254 = scalar_select %p253, %s250, 31
          %s255 = smul.addr %s252, 32
          %s256 = sadd.s32 %s254, %s255
          %s257 = smul.addr %s256, 4
          %s258 = scalar_lea.vmem %s1, %s257
          %s259 = smul.u32 16, %s22
        $region61: #{tpu_custom_call.1} parent=15 // pred_fallthru
          _
        // Predicated region
        $region62: #{tpu_custom_call.1} parent=15 // pred_check
          %p260 = pneg %p110
        $region63: #{tpu_custom_call.1} parent=15 // pred_check_branch
          %262 = sbr.rel (%p260) target = $region65
        $region64: #{tpu_custom_call.1} parent=15 // pred_region
          %s263 = sand.u32 %s100, 1
          %s264 = sand.u32 %s100, 1
          %s265 = smul.addr %s264, 16
          %s266 = scalar_lea.vmem [#allocation6], %s265
          %s267 = smul.addr %s20, 8
          %s268 = sadd.s32 %s22, %s267
          %s269 = smul.addr %s268, 4
          %s270 = scalar_lea.vmem %s2, %s269
          // Predicated region
          $region66: #{tpu_custom_call.1} parent=64 // pred_check
            _
          $region67: #{tpu_custom_call.1} parent=64 // pred_check_branch
            %272 = sbr.rel (0) target = $region69
          $region68: #{tpu_custom_call.1} parent=64 // pred_region
            // Predicated region
            $region70: #{tpu_custom_call.1} parent=68 // pred_check
              _
            $region71: #{tpu_custom_call.1} parent=68 // pred_check_branch
              %274 = sbr.rel target = $region73
            $region72: #{tpu_custom_call.1} parent=68 // pred_region
              // Predicated region
              $region85: #{tpu_custom_call.1} parent=72 // pred_check
                _
              $region86: #{tpu_custom_call.1} parent=72 // pred_check_branch
                %296 = sbr.rel (0) target = $region88
              $region87: #{tpu_custom_call.1} parent=72 // pred_region
                loop: start=0, step=1, limit=1
                $region89: #{tpu_custom_call.1} parent=87 // loop_pre_header
                  _
                $region90: #{tpu_custom_call.1} parent=87 // loop_header
                  %s298 = sphi 0, %s302
                  %p299 = scmp.ge.s32.totalorder %s298, 1
                  %s303 = sphi %s270, %s270
                  %s304 = sphi %s266, %s266
                $region91: #{tpu_custom_call.1} parent=87 // loop_header_branch
                  %301 = sbr.rel (%p299) target = $region95
                $region92: #{tpu_custom_call.1} parent=87 // loop_body
                  _
                $region93: #{tpu_custom_call.1} parent=87 // loop_footer
                  %s302 = sadd.s32 1, %s298
                $region94: #{tpu_custom_call.1} parent=87 // loop_footer_branch
                  %297 = sbr.rel target = $region90
                $region95: #{tpu_custom_call.1} parent=87 // loop_exit
                  _
                %s306 = ssub.s32 16, 1
                loop: start=0, step=1, limit=1
                $region96: #{tpu_custom_call.1} parent=87 // loop_pre_header
                  _
                $region97: #{tpu_custom_call.1} parent=87 // loop_header
                  %s308 = sphi 0, %s312
                  %p309 = scmp.ge.s32.totalorder %s308, 1
                  %s313 = sphi %s270, %s270
                  %s314 = sphi %s266, %s266
                $region98: #{tpu_custom_call.1} parent=87 // loop_header_branch
                  %311 = sbr.rel (%p309) target = $region102
                $region99: #{tpu_custom_call.1} parent=87 // loop_body
                  %v315 = vld [vmem:[%s313] sm:%s306]
                  %316 = vst [vmem:[%s314] sm:%s306] %v315
                  %v317 = vld [vmem:[%s313 + $0x8] sm:%s306]
                  %318 = vst [vmem:[%s314 + $0x4] sm:%s306] %v317
                  %v319 = vld [vmem:[%s313 + $0x10] sm:%s306]
                  %320 = vst [vmem:[%s314 + $0x8] sm:%s306] %v319
                  %v321 = vld [vmem:[%s313 + $0x18] sm:%s306]
                  %322 = vst [vmem:[%s314 + $0xc] sm:%s306] %v321
                $region100: #{tpu_custom_call.1} parent=87 // loop_footer
                  %s312 = sadd.s32 1, %s308
                $region101: #{tpu_custom_call.1} parent=87 // loop_footer_branch
                  %307 = sbr.rel target = $region97
                $region102: #{tpu_custom_call.1} parent=87 // loop_exit
                  _
              $region88: #{tpu_custom_call.1} parent=72 // pred_fallthru
                _
            $region73: #{tpu_custom_call.1} parent=68 // pred_fallthru
              _
            // Predicated region
            $region74: #{tpu_custom_call.1} parent=68 // pred_check
              _
            $region75: #{tpu_custom_call.1} parent=68 // pred_check_branch
              %276 = sbr.rel (0) target = $region77
            $region76: #{tpu_custom_call.1} parent=68 // pred_region
              %s278 = ssub.s32 16, 1
              loop: start=0, step=1, limit=1
              $region78: #{tpu_custom_call.1} parent=76 // loop_pre_header
                _
              $region79: #{tpu_custom_call.1} parent=76 // loop_header
                %s280 = sphi 0, %s284
                %p281 = scmp.ge.s32.totalorder %s280, 1
                %s285 = sphi %s270, %s270
                %s286 = sphi %s266, %s266
              $region80: #{tpu_custom_call.1} parent=76 // loop_header_branch
                %283 = sbr.rel (%p281) target = $region84
              $region81: #{tpu_custom_call.1} parent=76 // loop_body
                %v287 = vld [vmem:[%s285] sm:%s278]
                %288 = vst [vmem:[%s286] sm:%s278] %v287
                %v289 = vld [vmem:[%s285 + $0x8] sm:%s278]
                %290 = vst [vmem:[%s286 + $0x4] sm:%s278] %v289
                %v291 = vld [vmem:[%s285 + $0x10] sm:%s278]
                %292 = vst [vmem:[%s286 + $0x8] sm:%s278] %v291
                %v293 = vld [vmem:[%s285 + $0x18] sm:%s278]
                %294 = vst [vmem:[%s286 + $0xc] sm:%s278] %v293
              $region82: #{tpu_custom_call.1} parent=76 // loop_footer
                %s284 = sadd.s32 1, %s280
              $region83: #{tpu_custom_call.1} parent=76 // loop_footer_branch
                %279 = sbr.rel target = $region79
              $region84: #{tpu_custom_call.1} parent=76 // loop_exit
                _
            $region77: #{tpu_custom_call.1} parent=68 // pred_fallthru
              _
          $region69: #{tpu_custom_call.1} parent=64 // pred_fallthru
            _
          %323 = vnop
        $region65: #{tpu_custom_call.1} parent=15 // pred_fallthru
          _
        // Predicated region
        $region103: #{tpu_custom_call.1} parent=15 // pred_check
          %p324 = pneg %p138
        $region104: #{tpu_custom_call.1} parent=15 // pred_check_branch
          %326 = sbr.rel (%p324) target = $region106
        $region105: #{tpu_custom_call.1} parent=15 // pred_region
          %s327 = sand.u32 %s128, 1
          %s328 = sand.u32 %s128, 1
          %s329 = smul.addr %s328, 32
          %s330 = scalar_lea.vmem [#allocation7], %s329
          %s331 = smul.addr %s20, 8
          %s332 = sadd.s32 %s21, %s331
          %s333 = smul.addr %s332, 8
          %s334 = scalar_lea.vmem %s3, %s333
          // Predicated region
          $region107: #{tpu_custom_call.1} parent=105 // pred_check
            _
          $region108: #{tpu_custom_call.1} parent=105 // pred_check_branch
            %336 = sbr.rel (0) target = $region110
          $region109: #{tpu_custom_call.1} parent=105 // pred_region
            // Predicated region
            $region111: #{tpu_custom_call.1} parent=109 // pred_check
              _
            $region112: #{tpu_custom_call.1} parent=109 // pred_check_branch
              %338 = sbr.rel (0) target = $region114
            $region113: #{tpu_custom_call.1} parent=109 // pred_region
              // Predicated region
              $region126: #{tpu_custom_call.1} parent=113 // pred_check
                _
              $region127: #{tpu_custom_call.1} parent=113 // pred_check_branch
                %360 = sbr.rel (0) target = $region129
              $region128: #{tpu_custom_call.1} parent=113 // pred_region
                loop: start=0, step=1, limit=1
                $region130: #{tpu_custom_call.1} parent=128 // loop_pre_header
                  _
                $region131: #{tpu_custom_call.1} parent=128 // loop_header
                  %s362 = sphi 0, %s366
                  %p363 = scmp.ge.s32.totalorder %s362, 1
                  %s367 = sphi %s334, %s334
                  %s368 = sphi %s330, %s330
                $region132: #{tpu_custom_call.1} parent=128 // loop_header_branch
                  %365 = sbr.rel (%p363) target = $region136
                $region133: #{tpu_custom_call.1} parent=128 // loop_body
                  %v369 = vld [vmem:[%s367] sm:$0xff]
                  %370 = vst [vmem:[%s368] sm:$0xff] %v369
                  %v371 = vld [vmem:[%s367 + $0x10] sm:$0xff]
                  %372 = vst [vmem:[%s368 + $0x8] sm:$0xff] %v371
                  %v373 = vld [vmem:[%s367 + $0x20] sm:$0xff]
                  %374 = vst [vmem:[%s368 + $0x10] sm:$0xff] %v373
                  %v375 = vld [vmem:[%s367 + $0x30] sm:$0xff]
                  %376 = vst [vmem:[%s368 + $0x18] sm:$0xff] %v375
                $region134: #{tpu_custom_call.1} parent=128 // loop_footer
                  %s366 = sadd.s32 1, %s362
                $region135: #{tpu_custom_call.1} parent=128 // loop_footer_branch
                  %361 = sbr.rel target = $region131
                $region136: #{tpu_custom_call.1} parent=128 // loop_exit
                  _
              $region129: #{tpu_custom_call.1} parent=113 // pred_fallthru
                _
              // Predicated region
              $region137: #{tpu_custom_call.1} parent=113 // pred_check
                _
              $region138: #{tpu_custom_call.1} parent=113 // pred_check_branch
                %378 = sbr.rel target = $region140
              $region139: #{tpu_custom_call.1} parent=113 // pred_region
                _
              $region140: #{tpu_custom_call.1} parent=113 // pred_fallthru
                _
            $region114: #{tpu_custom_call.1} parent=109 // pred_fallthru
              _
            // Predicated region
            $region115: #{tpu_custom_call.1} parent=109 // pred_check
              _
            $region116: #{tpu_custom_call.1} parent=109 // pred_check_branch
              %340 = sbr.rel target = $region118
            $region117: #{tpu_custom_call.1} parent=109 // pred_region
              %s342 = ssub.s32 256, 1
              loop: start=0, step=1, limit=1
              $region119: #{tpu_custom_call.1} parent=117 // loop_pre_header
                _
              $region120: #{tpu_custom_call.1} parent=117 // loop_header
                %s344 = sphi 0, %s348
                %p345 = scmp.ge.s32.totalorder %s344, 1
                %s349 = sphi %s334, %s334
                %s350 = sphi %s330, %s330
              $region121: #{tpu_custom_call.1} parent=117 // loop_header_branch
                %347 = sbr.rel (%p345) target = $region125
              $region122: #{tpu_custom_call.1} parent=117 // loop_body
                %v351 = vld [vmem:[%s349] sm:%s342]
                %352 = vst [vmem:[%s350] sm:%s342] %v351
                %v353 = vld [vmem:[%s349 + $0x10] sm:%s342]
                %354 = vst [vmem:[%s350 + $0x8] sm:%s342] %v353
                %v355 = vld [vmem:[%s349 + $0x20] sm:%s342]
                %356 = vst [vmem:[%s350 + $0x10] sm:%s342] %v355
                %v357 = vld [vmem:[%s349 + $0x30] sm:%s342]
                %358 = vst [vmem:[%s350 + $0x18] sm:%s342] %v357
              $region123: #{tpu_custom_call.1} parent=117 // loop_footer
                %s348 = sadd.s32 1, %s344
              $region124: #{tpu_custom_call.1} parent=117 // loop_footer_branch
                %343 = sbr.rel target = $region120
              $region125: #{tpu_custom_call.1} parent=117 // loop_exit
                _
            $region118: #{tpu_custom_call.1} parent=109 // pred_fallthru
              _
          $region110: #{tpu_custom_call.1} parent=105 // pred_fallthru
            _
          %379 = vnop
        $region106: #{tpu_custom_call.1} parent=15 // pred_fallthru
          _
      $region16: #{tpu_custom_call.1} parent=5 // pred_fallthru
        _
      %p380 = scmp.le.s32.totalorder 1, %s13
      %p381 = scmp.lt.s32.totalorder %s13, 9
      %p382 = pnand %p380, %p381
      %p383 = pneg %p382
      // Predicated region
      $region141: #{tpu_custom_call.1} parent=5 // pred_check
        _
      $region142: #{tpu_custom_call.1} parent=5 // pred_check_branch
        %385 = sbr.rel (%p382) target = $region144
      $region143: #{tpu_custom_call.1} parent=5 // pred_region
        %s386 = ssub.s32 %s13, 1
        %s387 = sand.u32 %s47, 1
        %s388 = sand.u32 %s47, 1
        %s389 = smul.addr %s388, 8
        %s390 = scalar_lea.vmem [#allocation5], %s389
        // Predicated region
        $region145: #{tpu_custom_call.1} parent=143 // pred_check
          %p391 = pneg %p60
        $region146: #{tpu_custom_call.1} parent=143 // pred_check_branch
          %393 = sbr.rel (%p391) target = $region148
        $region147: #{tpu_custom_call.1} parent=143 // pred_region
          _
        $region148: #{tpu_custom_call.1} parent=143 // pred_fallthru
          _
        %s394 = sand.u32 %s103, 1
        %s395 = sand.u32 %s103, 1
        %s396 = smul.addr %s395, 16
        %s397 = scalar_lea.vmem [#allocation6], %s396
        // Predicated region
        $region149: #{tpu_custom_call.1} parent=143 // pred_check
          %p398 = pneg %p116
        $region150: #{tpu_custom_call.1} parent=143 // pred_check_branch
          %400 = sbr.rel (%p398) target = $region152
        $region151: #{tpu_custom_call.1} parent=143 // pred_region
          _
        $region152: #{tpu_custom_call.1} parent=143 // pred_fallthru
          _
        %s401 = sand.u32 %s131, 1
        %s402 = sand.u32 %s131, 1
        %s403 = smul.addr %s402, 32
        %s404 = scalar_lea.vmem [#allocation7], %s403
        // Predicated region
        $region153: #{tpu_custom_call.1} parent=143 // pred_check
          %p405 = pneg %p144
        $region154: #{tpu_custom_call.1} parent=143 // pred_check_branch
          %407 = sbr.rel (%p405) target = $region156
        $region155: #{tpu_custom_call.1} parent=143 // pred_region
          _
        $region156: #{tpu_custom_call.1} parent=143 // pred_fallthru
          _
        %s408 = sand.u32 %s47, 1
        %s409 = sand.u32 %s47, 1
        %s410 = smul.addr %s409, 8
        %s411 = scalar_lea.vmem [#allocation5], %s410
        %p412 = pneg %p60
        %p413 = pneg %p57
        %s414 = smul.u32 16, %s25
        %p415 = scmp.lt.s32.totalorder %s23, 1
        %s416 = scalar_select %p415, %s23, 1
        %p417 = scmp.lt.s32.totalorder %s414, 31
        %s418 = scalar_select %p417, %s414, 31
        %s419 = smul.addr %s416, 32
        %s420 = sadd.s32 %s418, %s419
        %s421 = smul.addr %s420, 4
        %s422 = scalar_lea.vmem %s1, %s421
        %p423 = pneg %p88
        %p424 = pneg %p85
        %s425 = sand.u32 %s103, 1
        %s426 = sand.u32 %s103, 1
        %s427 = smul.addr %s426, 16
        %s428 = scalar_lea.vmem [#allocation6], %s427
        %p429 = pneg %p116
        %p430 = pneg %p113
        %s431 = sand.u32 %s131, 1
        %s432 = sand.u32 %s131, 1
        %s433 = smul.addr %s432, 32
        %s434 = scalar_lea.vmem [#allocation7], %s433
        %p435 = pneg %p144
        %p436 = pneg %p141
        %p437 = pneg %p172
        %p438 = pneg %p169
        %s439 = sand.u32 %s159, 1
        %s440 = scalar_lea.sflag [#allocation9], %s439
        %s441 = sand.u32 %s159, 1
        %s442 = smul.addr %s441, 32
        %s443 = scalar_lea.vmem [#allocation8], %s442
        %s444 = smul.u32 16, %s25
        %p445 = scmp.lt.s32.totalorder %s23, 1
        %s446 = scalar_select %p445, %s23, 1
        %p447 = scmp.lt.s32.totalorder %s444, 31
        %s448 = scalar_select %p447, %s444, 31
        %s449 = smul.addr %s446, 32
        %s450 = sadd.s32 %s448, %s449
        %s451 = smul.addr %s450, 4
        %s452 = scalar_lea.vmem %s1, %s451
        %s453 = smul.u32 16, %s25
        %p455 = scmp.eq.s32.totalorder %s25, 0
        // Predicated region
        $region157: #{tpu_custom_call.1} parent=143 // pred_check
          %p456 = pneg %p455
        $region158: #{tpu_custom_call.1} parent=143 // pred_check_branch
          %458 = sbr.rel (%p456) target = $region160
        $region159: #{tpu_custom_call.1} parent=143 // pred_region
          %459 = vst [vmem:[#allocation2] sm:$0x1] -inf
          %460 = vst [vmem:[#allocation3] sm:$0x1] 0.0
          %461 = vst [vmem:[#allocation4] sm:$0xff] 0.0
          %462 = vst [vmem:[#allocation4 + $0x8] sm:$0xff] 0.0
          %463 = vst [vmem:[#allocation4 + $0x10] sm:$0xff] 0.0
          %464 = vst [vmem:[#allocation4 + $0x18] sm:$0xff] 0.0
        $region160: #{tpu_custom_call.1} parent=143 // pred_fallthru
          _
        %v465 = vld [vmem:[%s452] sm:$0xf]
        %v466 = vld [vmem:[%s452 + $0x4] sm:$0xf]
        %v467 = vld [vmem:[%s452 + $0x8] sm:$0xf]
        %v468 = vld [vmem:[%s452 + $0xc] sm:$0xf]
        %v469 = vld [vmem:[%s452 + $0x10] sm:$0xf]
        %v470 = vld [vmem:[%s452 + $0x14] sm:$0xf]
        %v471 = vld [vmem:[%s452 + $0x18] sm:$0xf]
        %v472 = vld [vmem:[%s452 + $0x1c] sm:$0xf]
        %v473 = vld [vmem:[%s452 + $0x20] sm:$0xf]
        %v474 = vld [vmem:[%s452 + $0x24] sm:$0xf]
        %v475 = vld [vmem:[%s452 + $0x28] sm:$0xf]
        %v476 = vld [vmem:[%s452 + $0x2c] sm:$0xf]
        %v477 = vld [vmem:[%s452 + $0x30] sm:$0xf]
        %v478 = vld [vmem:[%s452 + $0x34] sm:$0xf]
        %v479 = vld [vmem:[%s452 + $0x38] sm:$0xf]
        %v480 = vld [vmem:[%s452 + $0x3c] sm:$0xf]
        %v481 = vld [vmem:[%s390] sm:$0xf]
        %v482 = vld [vmem:[%s390 + $0x4] sm:$0xf]
        %v483 = vld [vmem:[%s397] sm:$0xf]
        %v484 = vld [vmem:[%s397 + $0x4] sm:$0xf]
        %v485 = vld [vmem:[%s397 + $0x8] sm:$0xf]
        %v486 = vld [vmem:[%s397 + $0xc] sm:$0xf]
        %v503 = vunpack.c.l.b16 %v465
        %v504 = vunpack.c.l.b16 %v466
        %v505 = vunpack.c.l.b16 %v467
        %v506 = vunpack.c.l.b16 %v468
        %v507 = vunpack.c.l.b16 %v469
        %v508 = vunpack.c.l.b16 %v470
        %v509 = vunpack.c.l.b16 %v471
        %v510 = vunpack.c.l.b16 %v472
        %v511 = vunpack.c.l.b16 %v473
        %v512 = vunpack.c.l.b16 %v474
        %v513 = vunpack.c.l.b16 %v475
        %v514 = vunpack.c.l.b16 %v476
        %v515 = vunpack.c.l.b16 %v477
        %v516 = vunpack.c.l.b16 %v478
        %v517 = vunpack.c.l.b16 %v479
        %v518 = vunpack.c.l.b16 %v480
        %v519 = vpack.c.b16 %v504, %v503
        %v520 = vpack.c.b16 %v506, %v505
        %v521 = vpack.c.b16 %v508, %v507
        %v522 = vpack.c.b16 %v510, %v509
        %v523 = vpack.c.b16 %v512, %v511
        %v524 = vpack.c.b16 %v514, %v513
        %v525 = vpack.c.b16 %v516, %v515
        %v526 = vpack.c.b16 %v518, %v517
        %v529 = vunpack.c.l.b16 %v481
        %v530 = vunpack.c.l.b16 %v482
        %v531 = vpack.c.b16 %v530, %v529
        %vm533 = vcmask 130048
        %v535 = vsel %vm533, %v519, 0
        %v538 = vsel %vm533, %v520, 0
        %v541 = vsel %vm533, %v521, 0
        %v544 = vsel %vm533, %v522, 0
        %v547 = vsel %vm533, %v523, 0
        %v550 = vsel %vm533, %v524, 0
        %v553 = vsel %vm533, %v525, 0
        %v556 = vsel %vm533, %v526, 0
        %558 = vmatprep.subr.bf16.mxu0 0
        %559 = vmatpush1.bf16.msra.mxu0 0
        %560 = vmatprep.subr.bf16.mxu0 0
        %561 = vmatpush1.bf16.msra.mxu0 0
        %562 = vmatprep.subr.bf16.mxu0 0
        %563 = vmatpush1.bf16.msra.mxu0 0
        %564 = vmatprep.subr.bf16.mxu0 0
        %565 = vmatpush1.bf16.msra.mxu0 0
        %566 = vmatprep.subr.bf16.mxu0 0
        %567 = vmatpush1.bf16.msra.mxu0 0
        %568 = vmatprep.subr.bf16.mxu0 0
        %569 = vmatpush1.bf16.msra.mxu0 0
        %570 = vmatprep.subr.bf16.mxu0 0
        %571 = vmatpush1.bf16.msra.mxu0 0
        %572 = vmatprep.subr.bf16.mxu0 0
        %573 = vmatpush1.bf16.msra.mxu0 %v531
        %574 = vmatprep.subr.bf16.mxu0 0
        %575 = vmatpush2.bf16.msra.mxu0 0
        %576 = vmatprep.subr.bf16.mxu0 0
        %577 = vmatpush2.bf16.msra.mxu0 0
        %578 = vmatprep.subr.bf16.mxu0 0
        %579 = vmatpush2.bf16.msra.mxu0 0
        %580 = vmatprep.subr.bf16.mxu0 0
        %581 = vmatpush2.bf16.msra.mxu0 0
        %582 = vmatprep.subr.bf16.mxu0 0
        %583 = vmatpush2.bf16.msra.mxu0 0
        %584 = vmatprep.subr.bf16.mxu0 0
        %585 = vmatpush2.bf16.msra.mxu0 0
        %586 = vmatprep.subr.bf16.mxu0 0
        %587 = vmatpush2.bf16.msra.mxu0 0
        %588 = vmatprep.subr.bf16.mxu0 0
        %589 = vmatpush2.bf16.msra.mxu0 0
        %590 = vmatprep.mubr.bf16.mxu0 0
        %591 = vmatmul.mubr.bf16.gmra.mxu0 %v535
        %v592 = vpop.f32.mrf.mxu0
        %v593 = vadd.f32 0.0, %v592
        %v594 = vpop.f32.mrf.mxu0
        %v595 = vpop.f32.mrf.mxu0
        %v596 = vadd.f32 0.0, %v595
        %v597 = vpop.f32.mrf.mxu0
        %598 = vmatprep.mubr.bf16.mxu0 0
        %599 = vmatmul.mubr.bf16.gmra.mxu0 %v538
        %v600 = vpop.f32.mrf.mxu0
        %v601 = vadd.f32 0.0, %v600
        %v602 = vpop.f32.mrf.mxu0
        %v603 = vpop.f32.mrf.mxu0
        %v604 = vadd.f32 0.0, %v603
        %v605 = vpop.f32.mrf.mxu0
        %606 = vmatprep.mubr.bf16.mxu0 0
        %607 = vmatmul.mubr.bf16.gmra.mxu0 %v541
        %v608 = vpop.f32.mrf.mxu0
        %v609 = vadd.f32 0.0, %v608
        %v610 = vpop.f32.mrf.mxu0
        %v611 = vpop.f32.mrf.mxu0
        %v612 = vadd.f32 0.0, %v611
        %v613 = vpop.f32.mrf.mxu0
        %614 = vmatprep.mubr.bf16.mxu0 0
        %615 = vmatmul.mubr.bf16.gmra.mxu0 %v544
        %v616 = vpop.f32.mrf.mxu0
        %v617 = vadd.f32 0.0, %v616
        %v618 = vpop.f32.mrf.mxu0
        %v619 = vpop.f32.mrf.mxu0
        %v620 = vadd.f32 0.0, %v619
        %v621 = vpop.f32.mrf.mxu0
        %622 = vmatprep.mubr.bf16.mxu0 0
        %623 = vmatmul.mubr.bf16.gmra.mxu0 %v547
        %v624 = vpop.f32.mrf.mxu0
        %v625 = vadd.f32 0.0, %v624
        %v626 = vpop.f32.mrf.mxu0
        %v627 = vpop.f32.mrf.mxu0
        %v628 = vadd.f32 0.0, %v627
        %v629 = vpop.f32.mrf.mxu0
        %630 = vmatprep.mubr.bf16.mxu0 0
        %631 = vmatmul.mubr.bf16.gmra.mxu0 %v550
        %v632 = vpop.f32.mrf.mxu0
        %v633 = vadd.f32 0.0, %v632
        %v634 = vpop.f32.mrf.mxu0
        %v635 = vpop.f32.mrf.mxu0
        %v636 = vadd.f32 0.0, %v635
        %v637 = vpop.f32.mrf.mxu0
        %638 = vmatprep.mubr.bf16.mxu0 0
        %639 = vmatmul.mubr.bf16.gmra.mxu0 %v553
        %v640 = vpop.f32.mrf.mxu0
        %v641 = vadd.f32 0.0, %v640
        %v642 = vpop.f32.mrf.mxu0
        %v643 = vpop.f32.mrf.mxu0
        %v644 = vadd.f32 0.0, %v643
        %v645 = vpop.f32.mrf.mxu0
        %646 = vmatprep.mubr.bf16.mxu0 0
        %647 = vmatmul.mubr.bf16.gmra.mxu0 %v556
        %v648 = vpop.f32.mrf.mxu0
        %v649 = vadd.f32 0.0, %v648
        %v650 = vpop.f32.mrf.mxu0
        %v651 = vpop.f32.mrf.mxu0
        %v652 = vadd.f32 0.0, %v651
        %v653 = vpop.f32.mrf.mxu0
        %654 = vdwg.mxu0
        %v655 = vld [vmem:[#allocation2] sm:$0x1]
        %v656 = vmax.f32 %v593, %v609
        %v657 = vmax.f32 %v596, %v612
        %v658 = vmax.f32 %v601, %v617
        %v659 = vmax.f32 %v604, %v620
        %v660 = vmax.f32 %v656, %v625
        %v661 = vmax.f32 %v657, %v628
        %v662 = vmax.f32 %v658, %v633
        %v663 = vmax.f32 %v659, %v636
        %v664 = vmax.f32 %v660, %v641
        %v665 = vmax.f32 %v661, %v644
        %v666 = vmax.f32 %v662, %v649
        %v667 = vmax.f32 %v663, %v652
        %v668 = vmax.f32 %v664, %v665
        %v669 = vmax.f32 %v666, %v667
        %v670 = vmax.f32 %v668, %v669
        %v671 = vrot.slane %v670, 4
        %v672 = vmax.f32 %v670, %v671
        %v673 = vrot.slane %v672, 2
        %v674 = vmax.f32 %v672, %v673
        %v675 = vrot.slane %v674, 1
        %v676 = vmax.f32 %v674, %v675
        %v677 = vmax.f32 %v655, %v676
        %v678 = vsub.f32 %v655, %v677
        %v679 = vmul.f32 %v678, 1.442695
        %v680 = vpow.pop %v679
        %v682 = vlaneseq
        %v683 = vshrl.u32 %v682, 7
        %v684 = vsub.s32 0, %v683
        %v685 = vrot.slane %v677, %v684
        %v687 = vsub.f32 %v593, %v685
        %v688 = vsub.f32 %v596, %v685
        %v689 = vsub.f32 %v601, %v685
        %v690 = vsub.f32 %v604, %v685
        %v691 = vsub.f32 %v609, %v685
        %v692 = vsub.f32 %v612, %v685
        %v693 = vsub.f32 %v617, %v685
        %v694 = vsub.f32 %v620, %v685
        %v695 = vsub.f32 %v625, %v685
        %v696 = vsub.f32 %v628, %v685
        %v697 = vsub.f32 %v633, %v685
        %v698 = vsub.f32 %v636, %v685
        %v699 = vsub.f32 %v641, %v685
        %v700 = vsub.f32 %v644, %v685
        %v701 = vsub.f32 %v649, %v685
        %v702 = vsub.f32 %v652, %v685
        %v703 = vmul.f32 %v687, 1.442695
        %v704 = vpow.pop %v703
        %v705 = vmul.f32 %v688, 1.442695
        %v706 = vpow.pop %v705
        %v707 = vmul.f32 %v689, 1.442695
        %v708 = vpow.pop %v707
        %v709 = vmul.f32 %v690, 1.442695
        %v710 = vpow.pop %v709
        %v711 = vmul.f32 %v691, 1.442695
        %v712 = vpow.pop %v711
        %v713 = vmul.f32 %v692, 1.442695
        %v714 = vpow.pop %v713
        %v715 = vmul.f32 %v693, 1.442695
        %v716 = vpow.pop %v715
        %v717 = vmul.f32 %v694, 1.442695
        %v718 = vpow.pop %v717
        %v719 = vmul.f32 %v695, 1.442695
        %v720 = vpow.pop %v719
        %v721 = vmul.f32 %v696, 1.442695
        %v722 = vpow.pop %v721
        %v723 = vmul.f32 %v697, 1.442695
        %v724 = vpow.pop %v723
        %v725 = vmul.f32 %v698, 1.442695
        %v726 = vpow.pop %v725
        %v727 = vmul.f32 %v699, 1.442695
        %v728 = vpow.pop %v727
        %v729 = vmul.f32 %v700, 1.442695
        %v730 = vpow.pop %v729
        %v731 = vmul.f32 %v701, 1.442695
        %v732 = vpow.pop %v731
        %v733 = vmul.f32 %v702, 1.442695
        %v734 = vpow.pop %v733
        %v735 = vld [vmem:[#allocation3] sm:$0x1]
        %v736 = vmul.f32 %v680, %v735
        %v737 = vadd.f32 %v704, %v706
        %v738 = vadd.f32 %v737, %v708
        %v739 = vadd.f32 %v738, %v710
        %v740 = vadd.f32 %v739, %v712
        %v741 = vadd.f32 %v740, %v714
        %v742 = vadd.f32 %v741, %v716
        %v743 = vadd.f32 %v742, %v718
        %v744 = vadd.f32 %v743, %v720
        %v745 = vadd.f32 %v744, %v722
        %v746 = vadd.f32 %v745, %v724
        %v747 = vadd.f32 %v746, %v726
        %v748 = vadd.f32 %v747, %v728
        %v749 = vadd.f32 %v748, %v730
        %v750 = vadd.f32 %v749, %v732
        %v751 = vadd.f32 %v750, %v734
        %v752 = vrot.slane %v751, 4
        %v753 = vadd.f32 %v751, %v752
        %v754 = vrot.slane %v753, 2
        %v755 = vadd.f32 %v753, %v754
        %v756 = vrot.slane %v755, 1
        %v757 = vadd.f32 %v755, %v756
        %v758 = vadd.f32 %v736, %v757
        %759 = vst [vmem:[#allocation3] sm:$0x1] %v758
        %v760 = vld [vmem:[#allocation4] sm:$0xff]
        %v761 = vld [vmem:[#allocation4 + $0x8] sm:$0xff]
        %v762 = vld [vmem:[#allocation4 + $0x10] sm:$0xff]
        %v763 = vld [vmem:[#allocation4 + $0x18] sm:$0xff]
        %v765 = vlaneseq
        %v766 = vshrl.u32 %v765, 7
        %v767 = vsub.s32 0, %v766
        %v768 = vrot.slane %v680, %v767
        %v770 = vmul.f32 %v768, %v760
        %v771 = vmul.f32 %v768, %v761
        %v772 = vmul.f32 %v768, %v762
        %v773 = vmul.f32 %v768, %v763
        %v774 = vpack.c.bf16 %v706, %v704
        %v775 = vpack.c.bf16 %v710, %v708
        %v776 = vpack.c.bf16 %v714, %v712
        %v777 = vpack.c.bf16 %v718, %v716
        %v778 = vpack.c.bf16 %v722, %v720
        %v779 = vpack.c.bf16 %v726, %v724
        %v780 = vpack.c.bf16 %v730, %v728
        %v781 = vpack.c.bf16 %v734, %v732
        %v786 = vunpack.c.l.b16 %v483
        %v787 = vunpack.c.l.b16 %v484
        %v788 = vunpack.c.l.b16 %v485
        %v789 = vunpack.c.l.b16 %v486
        %v790 = vpack.c.b16 %v787, %v786
        %v791 = vpack.c.b16 %v789, %v788
        %794 = vmatprep.subr.bf16.mxu0 0
        %795 = vmatpush1.bf16.msra.mxu0 %v781
        %796 = vmatprep.subr.bf16.mxu0 0
        %797 = vmatpush1.bf16.msra.mxu0 %v780
        %798 = vmatprep.subr.bf16.mxu0 0
        %799 = vmatpush1.bf16.msra.mxu0 %v779
        %800 = vmatprep.subr.bf16.mxu0 0
        %801 = vmatpush1.bf16.msra.mxu0 %v778
        %802 = vmatprep.subr.bf16.mxu0 0
        %803 = vmatpush1.bf16.msra.mxu0 %v777
        %804 = vmatprep.subr.bf16.mxu0 0
        %805 = vmatpush1.bf16.msra.mxu0 %v776
        %806 = vmatprep.subr.bf16.mxu0 0
        %807 = vmatpush1.bf16.msra.mxu0 %v775
        %808 = vmatprep.subr.bf16.mxu0 0
        %809 = vmatpush1.bf16.msra.mxu0 %v774
        %810 = vmatprep.subr.bf16.mxu0 0
        %811 = vmatpush2.bf16.msra.mxu0 0
        %812 = vmatprep.subr.bf16.mxu0 0
        %813 = vmatpush2.bf16.msra.mxu0 0
        %814 = vmatprep.subr.bf16.mxu0 0
        %815 = vmatpush2.bf16.msra.mxu0 0
        %816 = vmatprep.subr.bf16.mxu0 0
        %817 = vmatpush2.bf16.msra.mxu0 0
        %818 = vmatprep.subr.bf16.mxu0 0
        %819 = vmatpush2.bf16.msra.mxu0 0
        %820 = vmatprep.subr.bf16.mxu0 0
        %821 = vmatpush2.bf16.msra.mxu0 0
        %822 = vmatprep.subr.bf16.mxu0 0
        %823 = vmatpush2.bf16.msra.mxu0 0
        %824 = vmatprep.subr.bf16.mxu0 0
        %825 = vmatpush2.bf16.msra.mxu0 0
        %826 = vmatprep.mubr.bf16.mxu0 0
        %827 = vmatmul.mubr.bf16.gmra.mxu0 %v790
        %v828 = vpop.f32.mrf.mxu0
        %v829 = vadd.f32 0.0, %v828
        %v830 = vpop.f32.mrf.mxu0
        %v831 = vpop.f32.mrf.mxu0
        %v832 = vadd.f32 0.0, %v831
        %v833 = vpop.f32.mrf.mxu0
        %834 = vmatprep.mubr.bf16.mxu0 0
        %835 = vmatmul.mubr.bf16.gmra.mxu0 %v791
        %v836 = vpop.f32.mrf.mxu0
        %v837 = vadd.f32 0.0, %v836
        %v838 = vpop.f32.mrf.mxu0
        %v839 = vpop.f32.mrf.mxu0
        %v840 = vadd.f32 0.0, %v839
        %v841 = vpop.f32.mrf.mxu0
        %842 = vdwg.mxu0
        %v843 = vadd.f32 %v770, %v829
        %v844 = vadd.f32 %v771, %v832
        %v845 = vadd.f32 %v772, %v837
        %v846 = vadd.f32 %v773, %v840
        %847 = vst [vmem:[#allocation4] sm:$0xff] %v843
        %848 = vst [vmem:[#allocation4 + $0x8] sm:$0xff] %v844
        %849 = vst [vmem:[#allocation4 + $0x10] sm:$0xff] %v845
        %850 = vst [vmem:[#allocation4 + $0x18] sm:$0xff] %v846
        %851 = vst [vmem:[#allocation2] sm:$0x1] %v677
        %p852 = scmp.eq.s32.totalorder %s25, 1
        // Predicated region
        $region161: #{tpu_custom_call.1} parent=143 // pred_check
          %p853 = pneg %p852
        $region162: #{tpu_custom_call.1} parent=143 // pred_check_branch
          %855 = sbr.rel (%p853) target = $region164
        $region163: #{tpu_custom_call.1} parent=143 // pred_region
          %v856 = vld [vmem:[#allocation3] sm:$0x1]
          %v857 = vrcp.pop %v856
          %v858 = vld [vmem:[#allocation4] sm:$0xff]
          %v859 = vld [vmem:[#allocation4 + $0x8] sm:$0xff]
          %v860 = vld [vmem:[#allocation4 + $0x10] sm:$0xff]
          %v861 = vld [vmem:[#allocation4 + $0x18] sm:$0xff]
          %v863 = vlaneseq
          %v864 = vshrl.u32 %v863, 7
          %v865 = vsub.s32 0, %v864
          %v866 = vrot.slane %v857, %v865
          %v868 = vmul.f32 %v858, %v866
          %v869 = vmul.f32 %v859, %v866
          %v870 = vmul.f32 %v860, %v866
          %v871 = vmul.f32 %v861, %v866
          %v872 = vld [vmem:[%s404] sm:$0xff]
          %v873 = vld [vmem:[%s404 + $0x8] sm:$0xff]
          %v874 = vld [vmem:[%s404 + $0x10] sm:$0xff]
          %v875 = vld [vmem:[%s404 + $0x18] sm:$0xff]
          %v876 = vadd.f32 %v868, %v872
          %v877 = vadd.f32 %v869, %v873
          %v878 = vadd.f32 %v870, %v874
          %v879 = vadd.f32 %v871, %v875
          %880 = vst [vmem:[%s443] sm:$0xff] %v876
          %881 = vst [vmem:[%s443 + $0x8] sm:$0xff] %v877
          %882 = vst [vmem:[%s443 + $0x10] sm:$0xff] %v878
          %883 = vst [vmem:[%s443 + $0x18] sm:$0xff] %v879
        $region164: #{tpu_custom_call.1} parent=143 // pred_fallthru
          _
        %s884 = sand.u32 %s159, 1
        %s885 = scalar_lea.sflag [#allocation9], %s884
        %s886 = sand.u32 %s159, 1
        %s887 = smul.addr %s886, 32
        %s888 = scalar_lea.vmem [#allocation8], %s887
        // Predicated region
        $region165: #{tpu_custom_call.1} parent=143 // pred_check
          %p889 = pneg %p169
        $region166: #{tpu_custom_call.1} parent=143 // pred_check_branch
          %891 = sbr.rel (%p889) target = $region168
        $region167: #{tpu_custom_call.1} parent=143 // pred_region
          %s893 = ssub.s32 512, 512
          %894 = vsyncadd %s885, %s893
          %s895 = smul.addr %s23, 8
          %s896 = sadd.s32 %s24, %s895
          %s897 = smul.addr %s896, 128
          %s898 = scalar_lea.hbm %s4, %s897
          %s899 = sshll.u32 %s888, 4
          %s900 = int_to_ptr.vmem [resolvable:$true] %s899
          %905 = dma.vmem_to_hbm [thread:$0]  %s900, 512, %s898, %s885, 128, 256, 8
        $region168: #{tpu_custom_call.1} parent=143 // pred_fallthru
          _
      $region144: #{tpu_custom_call.1} parent=5 // pred_fallthru
        _
      %p906 = scmp.le.s32.totalorder 2, %s13
      // Predicated region
      $region169: #{tpu_custom_call.1} parent=5 // pred_check
        %p907 = pneg %p906
      $region170: #{tpu_custom_call.1} parent=5 // pred_check_branch
        %909 = sbr.rel (%p907) target = $region172
      $region171: #{tpu_custom_call.1} parent=5 // pred_region
        %s910 = ssub.s32 %s13, 2
        // Predicated region
        $region173: #{tpu_custom_call.1} parent=171 // pred_check
          %p911 = pneg %p175
        $region174: #{tpu_custom_call.1} parent=171 // pred_check_branch
          %913 = sbr.rel (%p911) target = $region176
        $region175: #{tpu_custom_call.1} parent=171 // pred_region
          %s914 = sand.u32 %s160, 1
          %s915 = scalar_lea.sflag [#allocation9], %s914
          %s916 = sand.u32 %s160, 1
          %s917 = smul.addr %s916, 32
          %s918 = scalar_lea.vmem [#allocation8], %s917
          %919 = dma.done %s915, 512
        $region176: #{tpu_custom_call.1} parent=171 // pred_fallthru
          _
      $region172: #{tpu_custom_call.1} parent=5 // pred_fallthru
        _
    $region6: #{tpu_custom_call.1} parent=1 // loop_footer
      %s17 = sadd.s32 1, %s13
    $region7: #{tpu_custom_call.1} parent=1 // loop_footer_branch
      %12 = sbr.rel target = $region3
    $region8: #{tpu_custom_call.1} parent=1 // loop_exit
      _
    %920 = vsyncpa [#allocation9], 1
    %s921 = scalar_lea.sflag [#allocation9], 1
    %922 = vsyncpa %s921, 1

</llo_original>
